<compile_context>
chip_gen: v7x
topology: tpu7x:2x2x1
jax: 0.10.0
libtpu: 0.0.40
codegen_flags: <defaults>
</compile_context>

<pallas_src>
import functools
import math

import jax
import jax.numpy as jnp
from jax.experimental import pallas as pl
from jax.experimental.pallas import tpu as pltpu


def _ceil_to(x, m):
    return (x + m - 1) // m * m


def _nce_kernel(wg_ref, wi_ref, img_ref, gen_ref,
                oi_ref, og_ref, ui_ref, ug_ref,
                *, use_softmax, T, momentum, kp1):
    wg = wg_ref[...]                        # (TB, K+1, D) gathered memory_gene rows
    wi = wi_ref[...]                        # (TB, K+1, D) gathered memory_image rows
    img = img_ref[...]                      # (TB, D) image features
    gen = gen_ref[...]                      # (TB, D) gene features

    # Batched (K+1)-way scores: elementwise multiply + lane reduction (exact f32).
    s_img = jnp.sum(wg * img[:, None, :], axis=-1)      # (TB, K+1)
    s_gen = jnp.sum(wi * gen[:, None, :], axis=-1)      # (TB, K+1)

    if use_softmax:
        # Module semantics: use_softmax=True only divides by the temperature.
        oi = s_img * (1.0 / T)
        og = s_gen * (1.0 / T)
    else:
        # Module semantics: plain softmax over the (K+1) axis (no T, no Z constant).
        def _softmax(s):
            e = jnp.exp(s - jnp.max(s, axis=-1, keepdims=True))
            return e / jnp.sum(e, axis=-1, keepdims=True)
        oi = _softmax(s_img)
        og = _softmax(s_gen)

    kpad = oi_ref.shape[-1]
    if kpad == kp1:
        oi_ref[...] = oi
        og_ref[...] = og
    else:
        # Lane-dense (TB, KPAD) output block: zero the pad, put scores in [:, :K+1].
        oi_ref[...] = jnp.zeros(oi_ref.shape, oi_ref.dtype)
        og_ref[...] = jnp.zeros(og_ref.shape, og_ref.dtype)
        oi_ref[:, :kp1] = oi
        og_ref[:, :kp1] = og

    # Fused momentum update of the positive rows.  Relies on the module's invariant
    # idx[:, 0] == index (positive sample in column 0) so the positive bank rows are
    # already resident in the gathered tiles.
    def _update(pos_row, feat):
        v = momentum * pos_row + (1.0 - momentum) * feat
        return v * jax.lax.rsqrt(jnp.sum(v * v, axis=-1, keepdims=True))

    ui_ref[...] = _update(wi[:, 0, :], img).astype(ui_ref.dtype)   # -> memory_image rows
    ug_ref[...] = _update(wg[:, 0, :], gen).astype(ug_ref.dtype)   # -> memory_gene rows


def _pick_tb(B, kp1, D):
    """Batch-tile size: multiple of 8 (sublane-dense) whose double-buffered gathered
    tiles (2 banks x 2 buffers x TB*(K+1)*D*4B) stay well under the default scoped
    VMEM budget.  Re-derive the cap for v7x (64 MiB physical) / v5e (16 MiB scoped)."""
    if B <= 8:
        return B
    budget = 24 << 20                       # conservative vs. 32 MiB scoped default
    cap = max(8, (budget // (4 * kp1 * D * 4)) // 8 * 8)
    return int(min(128, cap))


@functools.partial(jax.jit, static_argnames=("T", "momentum", "use_softmax"))
def nce_average_forward(image, gene, index, idx, memory_image, memory_gene,
                        *, T=0.07, momentum=0.5, use_softmax=False):
    """Functional NCEAverage forward.

    Returns (out_image, out_gene, new_memory_image, new_memory_gene);
    out_image / out_gene have shape (B, K+1, 1) like the torch.bmm output.
    """
    B, D = image.shape
    N = memory_image.shape[0]
    KP1 = idx.shape[1]

    TB = _pick_tb(B, KP1, D)
    Bpad = _ceil_to(B, TB)
    KPAD = _ceil_to(KP1, 128)

    idx32 = idx.astype(jnp.int32)
    index32 = index.astype(jnp.int32)

    img = image.astype(jnp.float32)
    gen = gene.astype(jnp.float32)
    if Bpad != B:
        pad = Bpad - B
        img = jnp.pad(img, ((0, pad), (0, 0)))
        gen = jnp.pad(gen, ((0, pad), (0, 0)))
        idx32 = jnp.pad(idx32, ((0, pad), (0, 0)))   # padded rows gather row 0; discarded

    # One big contiguous gather per bank feeding (Bpad, K+1, D) tiles.
    wg = jnp.take(memory_gene, idx32.reshape(-1), axis=0).reshape(Bpad, KP1, D).astype(jnp.float32)
    wi = jnp.take(memory_image, idx32.reshape(-1), axis=0).reshape(Bpad, KP1, D).astype(jnp.float32)

    grid_spec = pltpu.PrefetchScalarGridSpec(
        num_scalar_prefetch=0,
        grid=(Bpad // TB,),
        in_specs=[
            pl.BlockSpec((TB, KP1, D), lambda b: (b, 0, 0)),   # gathered memory_gene rows
            pl.BlockSpec((TB, KP1, D), lambda b: (b, 0, 0)),   # gathered memory_image rows
            pl.BlockSpec((TB, D), lambda b: (b, 0)),           # image features
            pl.BlockSpec((TB, D), lambda b: (b, 0)),           # gene features
        ],
        out_specs=[
            pl.BlockSpec((TB, KPAD), lambda b: (b, 0)),        # out_image scores (lane-dense)
            pl.BlockSpec((TB, KPAD), lambda b: (b, 0)),        # out_gene scores (lane-dense)
            pl.BlockSpec((TB, D), lambda b: (b, 0)),           # updated memory_image rows
            pl.BlockSpec((TB, D), lambda b: (b, 0)),           # updated memory_gene rows
        ],
    )

    out_img, out_gen, upd_img, upd_gen = pl.pallas_call(
        functools.partial(_nce_kernel, use_softmax=use_softmax, T=T,
                          momentum=momentum, kp1=KP1),
        grid_spec=grid_spec,
        out_shape=(
            jax.ShapeDtypeStruct((Bpad, KPAD), jnp.float32),
            jax.ShapeDtypeStruct((Bpad, KPAD), jnp.float32),
            jax.ShapeDtypeStruct((Bpad, D), memory_image.dtype),
            jax.ShapeDtypeStruct((Bpad, D), memory_gene.dtype),
        ),
        compiler_params=pltpu.CompilerParams(
            dimension_semantics=("parallel",)),   # per-block steps are independent
    )(wg, wi, img, gen)

    out_image = out_img[:B, :KP1].reshape(B, KP1, 1)   # (B, K+1, 1) like torch.bmm
    out_gene = out_gen[:B, :KP1].reshape(B, KP1, 1)

    # In-place row scatter of only B rows (torch index_copy_ semantics; duplicates in
    # `index` are undefined, exactly as in the module).
    new_mem_img = memory_image.at[index32].set(upd_img[:B].astype(memory_image.dtype))
    new_mem_gen = memory_gene.at[index32].set(upd_gen[:B].astype(memory_gene.dtype))
    return out_image, out_gene, new_mem_img, new_mem_gen


# ---------------------------------------------------------------------------
# Pure-JAX reference (mirrors the PyTorch forward) for a sanity check.
# ---------------------------------------------------------------------------
def _reference(image, gene, index, idx, memory_image, memory_gene,
               T=0.07, momentum=0.5, use_softmax=False):
    wg = memory_gene[idx]                               # (B, K+1, D)
    wi = memory_image[idx]
    oi = jnp.einsum('bkd,bd->bk', wg, image, precision=jax.lax.Precision.HIGHEST)
    og = jnp.einsum('bkd,bd->bk', wi, gene, precision=jax.lax.Precision.HIGHEST)
    if use_softmax:
        oi, og = oi / T, og / T
    else:
        oi = jax.nn.softmax(oi, axis=-1)
        og = jax.nn.softmax(og, axis=-1)
    oi = oi[:, :, None]
    og = og[:, :, None]

    def upd(mem, feat):
        pos = mem[index] * momentum + (1.0 - momentum) * feat
        norm = jnp.sqrt(jnp.sum(pos * pos, axis=1, keepdims=True))
        return mem.at[index].set(pos / norm)

    return oi, og, upd(memory_image, image), upd(memory_gene, gene)


if __name__ == "__main__":
    # Small, deterministic problem sizes.
    input_size = 32     # n_features (D)
    output_size = 64    # n_samples (memory bank rows, N)
    K = 8               # negatives per positive
    B = 2               # batch
    T = 0.07
    momentum = 0.5

    key = jax.random.PRNGKey(0)
    k_mi, k_mg, k_img, k_gen, k_idx = jax.random.split(key, 5)

    # Memory init as in the module: U(-stdv, stdv), stdv = 1/sqrt(input_size/3)
    stdv = 1.0 / math.sqrt(input_size / 3)
    memory_image = jax.random.uniform(k_mi, (output_size, input_size),
                                      minval=-stdv, maxval=stdv, dtype=jnp.float32)
    memory_gene = jax.random.uniform(k_mg, (output_size, input_size),
                                     minval=-stdv, maxval=stdv, dtype=jnp.float32)

    image = jax.random.normal(k_img, (B, input_size), dtype=jnp.float32)
    gene = jax.random.normal(k_gen, (B, input_size), dtype=jnp.float32)
    index = jnp.array([3, 17], dtype=jnp.int32)

    # TODO(synk): AliasMethod (multinomial alias sampling) has no Pallas equivalent;
    # with uniform unigrams it reduces to uniform sampling, done here with jax.random,
    # and column 0 is overwritten with the positive index exactly as in the module.
    idx = jax.random.randint(k_idx, (B, K + 1), 0, output_size, dtype=jnp.int32)
    idx = idx.at[:, 0].set(index)

    for use_softmax in (False, True):
        out_image, out_gene, new_mem_image, new_mem_gene = nce_average_forward(
            image, gene, index, idx, memory_image, memory_gene,
            T=T, momentum=momentum, use_softmax=use_softmax)
        jax.block_until_ready((out_image, out_gene, new_mem_image, new_mem_gene))

        ref_oi, ref_og, ref_mi, ref_mg = _reference(
            image, gene, index, idx, memory_image, memory_gene,
            T=T, momentum=momentum, use_softmax=use_softmax)

        assert out_image.shape == (B, K + 1, 1) and out_gene.shape == (B, K + 1, 1)
        assert jnp.allclose(out_image, ref_oi, rtol=1e-3, atol=1e-3)
        assert jnp.allclose(out_gene, ref_og, rtol=1e-3, atol=1e-3)
        assert jnp.allclose(new_mem_image, ref_mi, rtol=1e-3, atol=1e-3)
        assert jnp.allclose(new_mem_gene, ref_mg, rtol=1e-3, atol=1e-3)

    print("KERNEL_OK")
</pallas_src>

<mosaic_0001>
module attributes {stable_mosaic.version = 11 : i64} {
  func.func @_nce_kernel(%arg0: i32, %arg1: memref<2x9x32xf32, #tpu.memory_space<vmem>>, %arg2: memref<2x9x32xf32, #tpu.memory_space<vmem>>, %arg3: memref<2x32xf32, #tpu.memory_space<vmem>>, %arg4: memref<2x32xf32, #tpu.memory_space<vmem>>, %arg5: memref<2x128xf32, #tpu.memory_space<vmem>>, %arg6: memref<2x128xf32, #tpu.memory_space<vmem>>, %arg7: memref<2x32xf32, #tpu.memory_space<vmem>>, %arg8: memref<2x32xf32, #tpu.memory_space<vmem>>) attributes {dimension_semantics = [#tpu.dimension_semantics<parallel>], iteration_bounds = array<i64: 1>, scalar_prefetch = 0 : i64, scratch_operands = 0 : i64, tpu.core_type = #tpu.core_type<tc>, window_params = [{transform_indices = @transform_0, window_bounds = array<i64: 2, 9, 32>}, {transform_indices = @transform_1, window_bounds = array<i64: 2, 9, 32>}, {transform_indices = @transform_2, window_bounds = array<i64: 2, 32>}, {transform_indices = @transform_3, window_bounds = array<i64: 2, 32>}, {transform_indices = @transform_4, window_bounds = array<i64: 2, 128>}, {transform_indices = @transform_5, window_bounds = array<i64: 2, 128>}, {transform_indices = @transform_6, window_bounds = array<i64: 2, 32>}, {transform_indices = @transform_7, window_bounds = array<i64: 2, 32>}]} {
    %c0 = arith.constant 0 : index
    %c0_0 = arith.constant 0 : index
    %c0_1 = arith.constant 0 : index
    %0 = vector.load %arg1[%c0, %c0_0, %c0_1] : memref<2x9x32xf32, #tpu.memory_space<vmem>>, vector<2x9x32xf32>
    %c0_2 = arith.constant 0 : index
    %c0_3 = arith.constant 0 : index
    %c0_4 = arith.constant 0 : index
    %1 = vector.load %arg2[%c0_2, %c0_3, %c0_4] : memref<2x9x32xf32, #tpu.memory_space<vmem>>, vector<2x9x32xf32>
    %c0_5 = arith.constant 0 : index
    %c0_6 = arith.constant 0 : index
    %2 = vector.load %arg3[%c0_5, %c0_6] : memref<2x32xf32, #tpu.memory_space<vmem>>, vector<2x32xf32>
    %c0_7 = arith.constant 0 : index
    %c0_8 = arith.constant 0 : index
    %3 = vector.load %arg4[%c0_7, %c0_8] : memref<2x32xf32, #tpu.memory_space<vmem>>, vector<2x32xf32>
    %4 = vector.shape_cast %2 : vector<2x32xf32> to vector<2x1x32xf32>
    %5 = vector.broadcast %4 : vector<2x1x32xf32> to vector<2x9x32xf32>
    %6 = arith.mulf %0, %5 : vector<2x9x32xf32>
    %cst = arith.constant dense<0.000000e+00> : vector<2x9xf32>
    %7 = vector.multi_reduction <add>, %6, %cst [2] : vector<2x9x32xf32> to vector<2x9xf32>
    %8 = vector.shape_cast %3 : vector<2x32xf32> to vector<2x1x32xf32>
    %9 = vector.broadcast %8 : vector<2x1x32xf32> to vector<2x9x32xf32>
    %10 = arith.mulf %1, %9 : vector<2x9x32xf32>
    %cst_9 = arith.constant dense<0.000000e+00> : vector<2x9xf32>
    %11 = vector.multi_reduction <add>, %10, %cst_9 [2] : vector<2x9x32xf32> to vector<2x9xf32>
    %cst_10 = arith.constant dense<0xFF800000> : vector<2xf32>
    %12 = vector.multi_reduction <maximumf>, %7, %cst_10 [1] : vector<2x9xf32> to vector<2xf32>
    %13 = vector.shape_cast %12 : vector<2xf32> to vector<2x1xf32>
    %14 = vector.broadcast %13 : vector<2x1xf32> to vector<2x9xf32>
    %15 = arith.subf %7, %14 : vector<2x9xf32>
    %16 = math.exp %15 : vector<2x9xf32>
    %cst_11 = arith.constant dense<0.000000e+00> : vector<2xf32>
    %17 = vector.multi_reduction <add>, %16, %cst_11 [1] : vector<2x9xf32> to vector<2xf32>
    %18 = vector.shape_cast %17 : vector<2xf32> to vector<2x1xf32>
    %19 = vector.broadcast %18 : vector<2x1xf32> to vector<2x9xf32>
    %20 = arith.divf %16, %19 : vector<2x9xf32>
    %cst_12 = arith.constant dense<0xFF800000> : vector<2xf32>
    %21 = vector.multi_reduction <maximumf>, %11, %cst_12 [1] : vector<2x9xf32> to vector<2xf32>
    %22 = vector.shape_cast %21 : vector<2xf32> to vector<2x1xf32>
    %23 = vector.broadcast %22 : vector<2x1xf32> to vector<2x9xf32>
    %24 = arith.subf %11, %23 : vector<2x9xf32>
    %25 = math.exp %24 : vector<2x9xf32>
    %cst_13 = arith.constant dense<0.000000e+00> : vector<2xf32>
    %26 = vector.multi_reduction <add>, %25, %cst_13 [1] : vector<2x9xf32> to vector<2xf32>
    %27 = vector.shape_cast %26 : vector<2xf32> to vector<2x1xf32>
    %28 = vector.broadcast %27 : vector<2x1xf32> to vector<2x9xf32>
    %29 = arith.divf %25, %28 : vector<2x9xf32>
    %cst_14 = arith.constant 0.000000e+00 : f32
    %30 = vector.broadcast %cst_14 : f32 to vector<2x128xf32>
    %c0_15 = arith.constant 0 : index
    %c0_16 = arith.constant 0 : index
    %31 = vector.load %arg5[%c0_15, %c0_16] : memref<2x128xf32, #tpu.memory_space<vmem>>, vector<2x128xf32>
    tpu.vector_store %arg5[%c0_15, %c0_16], %30 {strides = array<i32>} : memref<2x128xf32, #tpu.memory_space<vmem>>, vector<2x128xf32>,
    %cst_17 = arith.constant 0.000000e+00 : f32
    %32 = vector.broadcast %cst_17 : f32 to vector<2x128xf32>
    %c0_18 = arith.constant 0 : index
    %c0_19 = arith.constant 0 : index
    %33 = vector.load %arg6[%c0_18, %c0_19] : memref<2x128xf32, #tpu.memory_space<vmem>>, vector<2x128xf32>
    tpu.vector_store %arg6[%c0_18, %c0_19], %32 {strides = array<i32>} : memref<2x128xf32, #tpu.memory_space<vmem>>, vector<2x128xf32>,
    %c0_20 = arith.constant 0 : index
    %c0_21 = arith.constant 0 : index
    %34 = vector.load %arg5[%c0_20, %c0_21] : memref<2x128xf32, #tpu.memory_space<vmem>>, vector<2x9xf32>
    tpu.vector_store %arg5[%c0_20, %c0_21], %20 {strides = array<i32>} : memref<2x128xf32, #tpu.memory_space<vmem>>, vector<2x9xf32>,
    %c0_22 = arith.constant 0 : index
    %c0_23 = arith.constant 0 : index
    %35 = vector.load %arg6[%c0_22, %c0_23] : memref<2x128xf32, #tpu.memory_space<vmem>>, vector<2x9xf32>
    tpu.vector_store %arg6[%c0_22, %c0_23], %29 {strides = array<i32>} : memref<2x128xf32, #tpu.memory_space<vmem>>, vector<2x9xf32>,
    %36 = vector.extract_strided_slice %1 {offsets = [0, 0, 0], sizes = [2, 1, 32], strides = [1, 1, 1]} : vector<2x9x32xf32> to vector<2x1x32xf32>
    %37 = vector.shape_cast %36 : vector<2x1x32xf32> to vector<2x32xf32>
    %cst_24 = arith.constant 5.000000e-01 : f32
    %38 = vector.broadcast %cst_24 : f32 to vector<2x32xf32>
    %39 = arith.mulf %38, %37 : vector<2x32xf32>
    %cst_25 = arith.constant 5.000000e-01 : f32
    %40 = vector.broadcast %cst_25 : f32 to vector<2x32xf32>
    %41 = arith.mulf %40, %2 : vector<2x32xf32>
    %42 = arith.addf %39, %41 : vector<2x32xf32>
    %43 = arith.mulf %42, %42 : vector<2x32xf32>
    %cst_26 = arith.constant dense<0.000000e+00> : vector<2xf32>
    %44 = vector.multi_reduction <add>, %43, %cst_26 [1] : vector<2x32xf32> to vector<2xf32>
    %45 = vector.shape_cast %44 : vector<2xf32> to vector<2x1xf32>
    %46 = math.rsqrt %45 : vector<2x1xf32>
    %47 = vector.broadcast %46 : vector<2x1xf32> to vector<2x32xf32>
    %48 = arith.mulf %42, %47 : vector<2x32xf32>
    %c0_27 = arith.constant 0 : index
    %c0_28 = arith.constant 0 : index
    %49 = vector.load %arg7[%c0_27, %c0_28] : memref<2x32xf32, #tpu.memory_space<vmem>>, vector<2x32xf32>
    tpu.vector_store %arg7[%c0_27, %c0_28], %48 {strides = array<i32>} : memref<2x32xf32, #tpu.memory_space<vmem>>, vector<2x32xf32>,
    %50 = vector.extract_strided_slice %0 {offsets = [0, 0, 0], sizes = [2, 1, 32], strides = [1, 1, 1]} : vector<2x9x32xf32> to vector<2x1x32xf32>
    %51 = vector.shape_cast %50 : vector<2x1x32xf32> to vector<2x32xf32>
    %cst_29 = arith.constant 5.000000e-01 : f32
    %52 = vector.broadcast %cst_29 : f32 to vector<2x32xf32>
    %53 = arith.mulf %52, %51 : vector<2x32xf32>
    %cst_30 = arith.constant 5.000000e-01 : f32
    %54 = vector.broadcast %cst_30 : f32 to vector<2x32xf32>
    %55 = arith.mulf %54, %3 : vector<2x32xf32>
    %56 = arith.addf %53, %55 : vector<2x32xf32>
    %57 = arith.mulf %56, %56 : vector<2x32xf32>
    %cst_31 = arith.constant dense<0.000000e+00> : vector<2xf32>
    %58 = vector.multi_reduction <add>, %57, %cst_31 [1] : vector<2x32xf32> to vector<2xf32>
    %59 = vector.shape_cast %58 : vector<2xf32> to vector<2x1xf32>
    %60 = math.rsqrt %59 : vector<2x1xf32>
    %61 = vector.broadcast %60 : vector<2x1xf32> to vector<2x32xf32>
    %62 = arith.mulf %56, %61 : vector<2x32xf32>
    %c0_32 = arith.constant 0 : index
    %c0_33 = arith.constant 0 : index
    %63 = vector.load %arg8[%c0_32, %c0_33] : memref<2x32xf32, #tpu.memory_space<vmem>>, vector<2x32xf32>
    tpu.vector_store %arg8[%c0_32, %c0_33], %62 {strides = array<i32>} : memref<2x32xf32, #tpu.memory_space<vmem>>, vector<2x32xf32>,
    return
  }
  func.func @transform_0(%arg0: i32) -> (i32, i32, i32) {
    %c0_i32 = arith.constant 0 : i32
    %c0_i32_0 = arith.constant 0 : i32
    %c0_i32_1 = arith.constant 0 : i32
    return %arg0, %c0_i32, %c0_i32_0 : i32, i32, i32
  }
  func.func @transform_1(%arg0: i32) -> (i32, i32, i32) {
    %c0_i32 = arith.constant 0 : i32
    %c0_i32_0 = arith.constant 0 : i32
    %c0_i32_1 = arith.constant 0 : i32
    return %arg0, %c0_i32, %c0_i32_0 : i32, i32, i32
  }
  func.func @transform_2(%arg0: i32) -> (i32, i32) {
    %c0_i32 = arith.constant 0 : i32
    %c0_i32_0 = arith.constant 0 : i32
    return %arg0, %c0_i32 : i32, i32
  }
  func.func @transform_3(%arg0: i32) -> (i32, i32) {
    %c0_i32 = arith.constant 0 : i32
    %c0_i32_0 = arith.constant 0 : i32
    return %arg0, %c0_i32 : i32, i32
  }
  func.func @transform_4(%arg0: i32) -> (i32, i32) {
    %c0_i32 = arith.constant 0 : i32
    %c0_i32_0 = arith.constant 0 : i32
    return %arg0, %c0_i32 : i32, i32
  }
  func.func @transform_5(%arg0: i32) -> (i32, i32) {
    %c0_i32 = arith.constant 0 : i32
    %c0_i32_0 = arith.constant 0 : i32
    return %arg0, %c0_i32 : i32, i32
  }
  func.func @transform_6(%arg0: i32) -> (i32, i32) {
    %c0_i32 = arith.constant 0 : i32
    %c0_i32_0 = arith.constant 0 : i32
    return %arg0, %c0_i32 : i32, i32
  }
  func.func @transform_7(%arg0: i32) -> (i32, i32) {
    %c0_i32 = arith.constant 0 : i32
    %c0_i32_0 = arith.constant 0 : i32
    return %arg0, %c0_i32 : i32, i32
  }
}

</mosaic_0001>

<llo_original>
// kernel: nce_average_forward.1
$region0: #{nce_average_forward.1}
  #allocation0 [shape = 'u32[]', space=smem, size = 0x4, offset = 0x4, fixed_abs, tag = 'smem constant byte address 0x4 - core index']
  #allocation1 [shape = 'u32[144,128]{1,0:T(1,128)}', space=vmem, size = 0x12000, scoped, tag = 'internal scratch']
  %s0 = inlined_call_operand.vmem [shape: f32[2,9,32], index: 0, kind: input, shape index: {}]
  %s1 = inlined_call_operand.vmem [shape: f32[2,9,32], index: 1, kind: input, shape index: {}]
  %s2 = inlined_call_operand.vmem [shape: f32[2,32], index: 2, kind: input, shape index: {}]
  %s3 = inlined_call_operand.vmem [shape: f32[2,32], index: 3, kind: input, shape index: {}]
  %s4 = inlined_call_operand.hbm [shape: f32[2,128], index: 4, kind: output, shape index: {0}]
  %s5 = inlined_call_operand.hbm [shape: f32[2,128], index: 5, kind: output, shape index: {1}]
  %s6 = inlined_call_operand.vmem [shape: f32[2,32], index: 6, kind: output, shape index: {2}]
  %s7 = inlined_call_operand.vmem [shape: f32[2,32], index: 7, kind: output, shape index: {3}]
  %8 = xla_tuple %s4, %s5, %s6, %s7
  %s9 = sld [smem:[#allocation0]]
  $region50: #{nce_average_forward.1} parent=0
    _
  %s11 = ssub.s32 1, %s9
  %s12 = scalar_select 0, %s11, %s9
  $region1: #{nce_average_forward.1} parent=0
    #allocation2 [shape = 'u8[1024]{0}', space=vmem, size = 0x400, scoped, tag = 'output window, operand 0, single buffered']
    #allocation3 [shape = 's32[1]{0}', space=sflag, size = 0x4, scoped, tag = 'scoped memory for nce_average_forward.1']
    #allocation4 [shape = 'u8[1024]{0}', space=vmem, size = 0x400, scoped, tag = 'output window, operand 1, single buffered']
    #allocation5 [shape = 's32[1]{0}', space=sflag, size = 0x4, scoped, tag = 'scoped memory for nce_average_forward.1']
    %13 = vsyncpa [#allocation3], 0
    %14 = vsyncpa [#allocation5], 0
    // Predicated region
    $region2: #{nce_average_forward.1} parent=1 // pred_check
      _
    $region3: #{nce_average_forward.1} parent=1 // pred_check_branch
      %16 = sbr.rel (0) target = $region5
    $region4: #{nce_average_forward.1} parent=1 // pred_region
      _
    $region5: #{nce_average_forward.1} parent=1 // pred_fallthru
      _
    // Predicated region
    $region6: #{nce_average_forward.1} parent=1 // pred_check
      _
    $region7: #{nce_average_forward.1} parent=1 // pred_check_branch
      %18 = sbr.rel (0) target = $region9
    $region8: #{nce_average_forward.1} parent=1 // pred_region
      _
    $region9: #{nce_average_forward.1} parent=1 // pred_fallthru
      _
    // Predicated region
    $region10: #{nce_average_forward.1} parent=1 // pred_check
      _
    $region11: #{nce_average_forward.1} parent=1 // pred_check_branch
      %20 = sbr.rel (0) target = $region13
    $region12: #{nce_average_forward.1} parent=1 // pred_region
      _
    $region13: #{nce_average_forward.1} parent=1 // pred_fallthru
      _
    // Predicated region
    $region14: #{nce_average_forward.1} parent=1 // pred_check
      _
    $region15: #{nce_average_forward.1} parent=1 // pred_check_branch
      %22 = sbr.rel (0) target = $region17
    $region16: #{nce_average_forward.1} parent=1 // pred_region
      _
    $region17: #{nce_average_forward.1} parent=1 // pred_fallthru
      _
    %v23 = vld [vmem:[%s0] sm:$0xff]
    %v24 = vld [vmem:[%s0 + $0x8] sm:$0x1]
    %v25 = vld [vmem:[%s0 + $0x10] sm:$0xff]
    %v26 = vld [vmem:[%s0 + $0x18] sm:$0x1]
    %v27 = vld [vmem:[%s1] sm:$0xff]
    %v28 = vld [vmem:[%s1 + $0x8] sm:$0x1]
    %v29 = vld [vmem:[%s1 + $0x10] sm:$0xff]
    %v30 = vld [vmem:[%s1 + $0x18] sm:$0x1]
    %v31 = vld [vmem:[%s2] sm:$0x3]
    %v32 = vld [vmem:[%s3] sm:$0x3]
    %v35 = vunpack.c.l.s4 1966171168
    %v36 = vunpack.c.0.s8 %v35
    %v37 = vlaneseq
    %v38 = vshrl.u32 %v37, 7
    %v39 = vsub.s32 %v36, %v38
    %v40 = vrot.slane %v31, %v39
    %v41 = vcombine.high %v40, %v40
    %v43 = vunpack.c.l.s4 1966171168
    %v44 = vunpack.c.0.s8 %v43
    %v45 = vlaneseq
    %v46 = vshrl.u32 %v45, 7
    %v47 = vsub.s32 %v44, %v46
    %v48 = vrot.slane %v40, %v47
    %v50 = vunpack.c.l.s4 1966171168
    %v51 = vunpack.c.0.s8 %v50
    %v52 = vlaneseq
    %v53 = vshrl.u32 %v52, 7
    %v54 = vsub.s32 %v51, %v53
    %v55 = vrot.slane %v41, %v54
    %v56 = vlaneseq
    %v57 = vshrl.u32 %v56, 7
    %v58 = vsub.s32 0, %v57
    %v59 = vrot.slane %v48, %v58
    %v60 = vlaneseq
    %v61 = vshrl.u32 %v60, 7
    %v62 = vsub.s32 0, %v61
    %v63 = vrot.slane %v55, %v62
    %v66 = vmul.f32 %v23, %v59
    %v67 = vmul.f32 %v24, %v59
    %v68 = vmul.f32 %v25, %v63
    %v69 = vmul.f32 %v26, %v63
    %vm70 = vcmask 261120
    %v71 = vsel %vm70, %v66, 0.0
    %72 = vadd.xlane.f32.xlu0 %v71
    %v73 = vpop.xlane.xlu0 %72
    %vm74 = vcmask 253952
    %v75 = vsel %vm74, %v67, 0.0
    %76 = vadd.xlane.f32.xlu0 %v75
    %v77 = vpop.xlane.xlu0 %76
    %v78 = vsel %vm70, %v68, 0.0
    %79 = vadd.xlane.f32.xlu0 %v78
    %v80 = vpop.xlane.xlu0 %79
    %v81 = vsel %vm74, %v69, 0.0
    %82 = vadd.xlane.f32.xlu0 %v81
    %v83 = vpop.xlane.xlu0 %82
    %v86 = vunpack.c.l.s4 1966171168
    %v87 = vunpack.c.0.s8 %v86
    %v88 = vlaneseq
    %v89 = vshrl.u32 %v88, 7
    %v90 = vsub.s32 %v87, %v89
    %v91 = vrot.slane %v32, %v90
    %v92 = vcombine.high %v91, %v91
    %v94 = vunpack.c.l.s4 1966171168
    %v95 = vunpack.c.0.s8 %v94
    %v96 = vlaneseq
    %v97 = vshrl.u32 %v96, 7
    %v98 = vsub.s32 %v95, %v97
    %v99 = vrot.slane %v91, %v98
    %v101 = vunpack.c.l.s4 1966171168
    %v102 = vunpack.c.0.s8 %v101
    %v103 = vlaneseq
    %v104 = vshrl.u32 %v103, 7
    %v105 = vsub.s32 %v102, %v104
    %v106 = vrot.slane %v92, %v105
    %v107 = vlaneseq
    %v108 = vshrl.u32 %v107, 7
    %v109 = vsub.s32 0, %v108
    %v110 = vrot.slane %v99, %v109
    %v111 = vlaneseq
    %v112 = vshrl.u32 %v111, 7
    %v113 = vsub.s32 0, %v112
    %v114 = vrot.slane %v106, %v113
    %v117 = vmul.f32 %v27, %v110
    %v118 = vmul.f32 %v28, %v110
    %v119 = vmul.f32 %v29, %v114
    %v120 = vmul.f32 %v30, %v114
    %v121 = vsel %vm70, %v117, 0.0
    %122 = vadd.xlane.f32.xlu0 %v121
    %v123 = vpop.xlane.xlu0 %122
    %v124 = vsel %vm74, %v118, 0.0
    %125 = vadd.xlane.f32.xlu0 %v124
    %v126 = vpop.xlane.xlu0 %125
    %v127 = vsel %vm70, %v119, 0.0
    %128 = vadd.xlane.f32.xlu0 %v127
    %v129 = vpop.xlane.xlu0 %128
    %v130 = vsel %vm74, %v120, 0.0
    %131 = vadd.xlane.f32.xlu0 %v130
    %v132 = vpop.xlane.xlu0 %131
    %v137 = vlaneseq
    %v138 = vand.u32 %v137, 127
    %v139 = vlaneseq
    %v140 = vshrl.u32 %v139, 7
    %v141 = vsub.s32 %v138, %v140
    %v142 = vrot.slane %v73, %v141
    %v143 = vadd.s32 %v138, 4294967288
    %v144 = vlaneseq
    %v145 = vshrl.u32 %v144, 7
    %v146 = vsub.s32 %v143, %v145
    %v147 = vrot.slane %v77, %v146
    %vm148 = vcmask 130112
    %v149 = vsel %vm148, %v147, %v142
    %v150 = vlaneseq
    %v151 = vshrl.u32 %v150, 7
    %v152 = vsub.s32 %v138, %v151
    %v153 = vrot.slane %v80, %v152
    %v154 = vlaneseq
    %v155 = vshrl.u32 %v154, 7
    %v156 = vsub.s32 %v143, %v155
    %v157 = vrot.slane %v83, %v156
    %v158 = vsel %vm148, %v157, %v153
    %vm159 = vcmask 1041409
    %v160 = vsel %vm159, %v158, %v149
    %vm162 = vcmask 66560
    %v163 = vsel %vm162, %v160, -inf
    %164 = vmax.xlane.f32.xlu0 %v163
    %v165 = vpop.xlane.xlu0 %164
    %v167 = vlaneseq
    %v168 = vshrl.u32 %v167, 7
    %v169 = vsub.s32 0, %v168
    %v170 = vrot.slane %v165, %v169
    %v171 = vlaneseq
    %v172 = vshrl.u32 %v171, 7
    %v173 = vsub.s32 1, %v172
    %v174 = vrot.slane %v165, %v173
    %v177 = vsub.f32 %v73, %v170
    %v178 = vsub.f32 %v77, %v170
    %v179 = vsub.f32 %v80, %v174
    %v180 = vsub.f32 %v83, %v174
    %v181 = vmul.f32 %v177, 1.442695
    %v182 = vpow.pop %v181
    %v183 = vmul.f32 %v178, 1.442695
    %v184 = vpow.pop %v183
    %v185 = vmul.f32 %v179, 1.442695
    %v186 = vpow.pop %v185
    %v187 = vmul.f32 %v180, 1.442695
    %v188 = vpow.pop %v187
    %193 = vset.pattern.permute.xlu0 0
    %194 = vperm.xlu0 %193, %v182
    %v195 = vpop.permute.xlu0 %194
    %196 = vset.pattern.permute.xlu0 0
    %197 = vperm.xlu0 %196, %v184
    %v198 = vpop.permute.xlu0 %197
    %199 = vset.pattern.permute.xlu0 0
    %200 = vperm.xlu0 %199, %v186
    %v201 = vpop.permute.xlu0 %200
    %202 = vset.pattern.permute.xlu0 0
    %203 = vperm.xlu0 %202, %v188
    %v204 = vpop.permute.xlu0 %203
    %v205 = vlaneseq
    %v206 = vshrl.u32 %v205, 7
    %v207 = vsub.s32 %v138, %v206
    %v208 = vrot.slane %v195, %v207
    %v209 = vlaneseq
    %v210 = vshrl.u32 %v209, 7
    %v211 = vsub.s32 %v143, %v210
    %v212 = vrot.slane %v198, %v211
    %v213 = vsel %vm148, %v212, %v208
    %v214 = vlaneseq
    %v215 = vshrl.u32 %v214, 7
    %v216 = vsub.s32 %v138, %v215
    %v217 = vrot.slane %v201, %v216
    %v218 = vlaneseq
    %v219 = vshrl.u32 %v218, 7
    %v220 = vsub.s32 %v143, %v219
    %v221 = vrot.slane %v204, %v220
    %v222 = vsel %vm148, %v221, %v217
    %v223 = vsel %vm159, %v222, %v213
    %v225 = vsel %vm162, %v223, 0.0
    %226 = vadd.xlane.f32.xlu0 %v225
    %v227 = vpop.xlane.xlu0 %226
    %v229 = vlaneseq
    %v230 = vshrl.u32 %v229, 7
    %v231 = vsub.s32 0, %v230
    %v232 = vrot.slane %v227, %v231
    %v233 = vlaneseq
    %v234 = vshrl.u32 %v233, 7
    %v235 = vsub.s32 1, %v234
    %v236 = vrot.slane %v227, %v235
    %v239 = vrcp.pop %v232
    %v240 = vmul.f32 %v182, %v239
    %v241 = vmul.f32 %v184, %v239
    %v242 = vrcp.pop %v236
    %v243 = vmul.f32 %v186, %v242
    %v244 = vmul.f32 %v188, %v242
    %v249 = vlaneseq
    %v250 = vshrl.u32 %v249, 7
    %v251 = vsub.s32 %v138, %v250
    %v252 = vrot.slane %v123, %v251
    %v253 = vlaneseq
    %v254 = vshrl.u32 %v253, 7
    %v255 = vsub.s32 %v143, %v254
    %v256 = vrot.slane %v126, %v255
    %v257 = vsel %vm148, %v256, %v252
    %v258 = vlaneseq
    %v259 = vshrl.u32 %v258, 7
    %v260 = vsub.s32 %v138, %v259
    %v261 = vrot.slane %v129, %v260
    %v262 = vlaneseq
    %v263 = vshrl.u32 %v262, 7
    %v264 = vsub.s32 %v143, %v263
    %v265 = vrot.slane %v132, %v264
    %v266 = vsel %vm148, %v265, %v261
    %v267 = vsel %vm159, %v266, %v257
    %v269 = vsel %vm162, %v267, -inf
    %270 = vmax.xlane.f32.xlu0 %v269
    %v271 = vpop.xlane.xlu0 %270
    %v273 = vlaneseq
    %v274 = vshrl.u32 %v273, 7
    %v275 = vsub.s32 0, %v274
    %v276 = vrot.slane %v271, %v275
    %v277 = vlaneseq
    %v278 = vshrl.u32 %v277, 7
    %v279 = vsub.s32 1, %v278
    %v280 = vrot.slane %v271, %v279
    %v283 = vsub.f32 %v123, %v276
    %v284 = vsub.f32 %v126, %v276
    %v285 = vsub.f32 %v129, %v280
    %v286 = vsub.f32 %v132, %v280
    %v287 = vmul.f32 %v283, 1.442695
    %v288 = vpow.pop %v287
    %v289 = vmul.f32 %v284, 1.442695
    %v290 = vpow.pop %v289
    %v291 = vmul.f32 %v285, 1.442695
    %v292 = vpow.pop %v291
    %v293 = vmul.f32 %v286, 1.442695
    %v294 = vpow.pop %v293
    %299 = vset.pattern.permute.xlu0 0
    %300 = vperm.xlu0 %299, %v288
    %v301 = vpop.permute.xlu0 %300
    %302 = vset.pattern.permute.xlu0 0
    %303 = vperm.xlu0 %302, %v290
    %v304 = vpop.permute.xlu0 %303
    %305 = vset.pattern.permute.xlu0 0
    %306 = vperm.xlu0 %305, %v292
    %v307 = vpop.permute.xlu0 %306
    %308 = vset.pattern.permute.xlu0 0
    %309 = vperm.xlu0 %308, %v294
    %v310 = vpop.permute.xlu0 %309
    %v311 = vlaneseq
    %v312 = vshrl.u32 %v311, 7
    %v313 = vsub.s32 %v138, %v312
    %v314 = vrot.slane %v301, %v313
    %v315 = vlaneseq
    %v316 = vshrl.u32 %v315, 7
    %v317 = vsub.s32 %v143, %v316
    %v318 = vrot.slane %v304, %v317
    %v319 = vsel %vm148, %v318, %v314
    %v320 = vlaneseq
    %v321 = vshrl.u32 %v320, 7
    %v322 = vsub.s32 %v138, %v321
    %v323 = vrot.slane %v307, %v322
    %v324 = vlaneseq
    %v325 = vshrl.u32 %v324, 7
    %v326 = vsub.s32 %v143, %v325
    %v327 = vrot.slane %v310, %v326
    %v328 = vsel %vm148, %v327, %v323
    %v329 = vsel %vm159, %v328, %v319
    %v331 = vsel %vm162, %v329, 0.0
    %332 = vadd.xlane.f32.xlu0 %v331
    %v333 = vpop.xlane.xlu0 %332
    %v335 = vlaneseq
    %v336 = vshrl.u32 %v335, 7
    %v337 = vsub.s32 0, %v336
    %v338 = vrot.slane %v333, %v337
    %v339 = vlaneseq
    %v340 = vshrl.u32 %v339, 7
    %v341 = vsub.s32 1, %v340
    %v342 = vrot.slane %v333, %v341
    %v345 = vrcp.pop %v338
    %v346 = vmul.f32 %v288, %v345
    %v347 = vmul.f32 %v290, %v345
    %v348 = vrcp.pop %v342
    %v349 = vmul.f32 %v292, %v348
    %v350 = vmul.f32 %v294, %v348
    %351 = vst [vmem:[#allocation2] sm:$0x3] 0.0
    %352 = vst [vmem:[#allocation4] sm:$0x3] 0.0
    %357 = vset.pattern.permute.xlu0 0
    %358 = vperm.xlu0 %357, %v240
    %v359 = vpop.permute.xlu0 %358
    %360 = vset.pattern.permute.xlu0 0
    %361 = vperm.xlu0 %360, %v241
    %v362 = vpop.permute.xlu0 %361
    %363 = vset.pattern.permute.xlu0 0
    %364 = vperm.xlu0 %363, %v243
    %v365 = vpop.permute.xlu0 %364
    %366 = vset.pattern.permute.xlu0 0
    %367 = vperm.xlu0 %366, %v244
    %v368 = vpop.permute.xlu0 %367
    %v369 = vlaneseq
    %v370 = vshrl.u32 %v369, 7
    %v371 = vsub.s32 %v138, %v370
    %v372 = vrot.slane %v359, %v371
    %v373 = vlaneseq
    %v374 = vshrl.u32 %v373, 7
    %v375 = vsub.s32 %v143, %v374
    %v376 = vrot.slane %v362, %v375
    %v377 = vsel %vm148, %v376, %v372
    %v378 = vlaneseq
    %v379 = vshrl.u32 %v378, 7
    %v380 = vsub.s32 %v138, %v379
    %v381 = vrot.slane %v365, %v380
    %v382 = vlaneseq
    %v383 = vshrl.u32 %v382, 7
    %v384 = vsub.s32 %v143, %v383
    %v385 = vrot.slane %v368, %v384
    %v386 = vsel %vm148, %v385, %v381
    %v387 = vsel %vm159, %v386, %v377
    %389 = vst.msk [vmem:[#allocation2] sm:$0x3] %vm162, %v387
    %394 = vset.pattern.permute.xlu0 0
    %395 = vperm.xlu0 %394, %v346
    %v396 = vpop.permute.xlu0 %395
    %397 = vset.pattern.permute.xlu0 0
    %398 = vperm.xlu0 %397, %v347
    %v399 = vpop.permute.xlu0 %398
    %400 = vset.pattern.permute.xlu0 0
    %401 = vperm.xlu0 %400, %v349
    %v402 = vpop.permute.xlu0 %401
    %403 = vset.pattern.permute.xlu0 0
    %404 = vperm.xlu0 %403, %v350
    %v405 = vpop.permute.xlu0 %404
    %v406 = vlaneseq
    %v407 = vshrl.u32 %v406, 7
    %v408 = vsub.s32 %v138, %v407
    %v409 = vrot.slane %v396, %v408
    %v410 = vlaneseq
    %v411 = vshrl.u32 %v410, 7
    %v412 = vsub.s32 %v143, %v411
    %v413 = vrot.slane %v399, %v412
    %v414 = vsel %vm148, %v413, %v409
    %v415 = vlaneseq
    %v416 = vshrl.u32 %v415, 7
    %v417 = vsub.s32 %v138, %v416
    %v418 = vrot.slane %v402, %v417
    %v419 = vlaneseq
    %v420 = vshrl.u32 %v419, 7
    %v421 = vsub.s32 %v143, %v420
    %v422 = vrot.slane %v405, %v421
    %v423 = vsel %vm148, %v422, %v418
    %v424 = vsel %vm159, %v423, %v414
    %426 = vst.msk [vmem:[#allocation4] sm:$0x3] %vm162, %v424
    %v427 = vmul.f32 %v27, 0.5
    %v428 = vmul.f32 %v29, 0.5
    %v429 = vmul.f32 %v31, 0.5
    %v431 = vrot.slane %v429, 1
    %v434 = vadd.f32 %v427, %v429
    %v435 = vadd.f32 %v428, %v431
    %v436 = vmul.f32 %v434, %v434
    %v437 = vmul.f32 %v435, %v435
    %v440 = vrot.slane %v437, 7
    %v441 = vsel %vm159, %v440, %v436
    %vm443 = vcmask 254976
    %v444 = vsel %vm443, %v441, 0.0
    %445 = vadd.xlane.f32.xlu0 %v444
    %v446 = vpop.xlane.xlu0 %445
    %v447 = vrsqrt.pop %v446
    %v449 = vrot.slane %v447, 1
    %v452 = vmul.f32 %v434, %v447
    %v453 = vmul.f32 %v435, %v449
    %v456 = vrot.slane %v453, 7
    %v457 = vsel %vm159, %v456, %v452
    %459 = vst.msk [vmem:[%s6] sm:$0x3] %vm443, %v457
    %v460 = vmul.f32 %v23, 0.5
    %v461 = vmul.f32 %v25, 0.5
    %v462 = vmul.f32 %v32, 0.5
    %v464 = vrot.slane %v462, 1
    %v467 = vadd.f32 %v460, %v462
    %v468 = vadd.f32 %v461, %v464
    %v469 = vmul.f32 %v467, %v467
    %v470 = vmul.f32 %v468, %v468
    %v473 = vrot.slane %v470, 7
    %v474 = vsel %vm159, %v473, %v469
    %v476 = vsel %vm443, %v474, 0.0
    %477 = vadd.xlane.f32.xlu0 %v476
    %v478 = vpop.xlane.xlu0 %477
    %v479 = vrsqrt.pop %v478
    %v481 = vrot.slane %v479, 1
    %v484 = vmul.f32 %v467, %v479
    %v485 = vmul.f32 %v468, %v481
    %v488 = vrot.slane %v485, 7
    %v489 = vsel %vm159, %v488, %v484
    %491 = vst.msk [vmem:[%s7] sm:$0x3] %vm443, %v489
    // Predicated region
    $region18: #{nce_average_forward.1} parent=1 // pred_check
      _
    $region19: #{nce_average_forward.1} parent=1 // pred_check_branch
      %493 = sbr.rel (0) target = $region21
    $region20: #{nce_average_forward.1} parent=1 // pred_region
      %s495 = ssub.s32 32, 32
      %496 = vsyncadd [#allocation3], %s495
      %s498 = sshll.u32 [#allocation2], 4
      %s499 = int_to_ptr.vmem [resolvable:$true] %s498
      %501 = dma.vmem_to_hbm [thread:$0]  %s499, 32, %s4, [#allocation3]
    $region21: #{nce_average_forward.1} parent=1 // pred_fallthru
      _
    // Predicated region
    $region22: #{nce_average_forward.1} parent=1 // pred_check
      _
    $region23: #{nce_average_forward.1} parent=1 // pred_check_branch
      %503 = sbr.rel (0) target = $region25
    $region24: #{nce_average_forward.1} parent=1 // pred_region
      %s505 = ssub.s32 32, 32
      %506 = vsyncadd [#allocation5], %s505
      %s508 = sshll.u32 [#allocation4], 4
      %s509 = int_to_ptr.vmem [resolvable:$true] %s508
      %511 = dma.vmem_to_hbm [thread:$0]  %s509, 32, %s5, [#allocation5]
    $region25: #{nce_average_forward.1} parent=1 // pred_fallthru
      _
    // Predicated region
    $region26: #{nce_average_forward.1} parent=1 // pred_check
      _
    $region27: #{nce_average_forward.1} parent=1 // pred_check_branch
      %513 = sbr.rel (0) target = $region29
    $region28: #{nce_average_forward.1} parent=1 // pred_region
      _
    $region29: #{nce_average_forward.1} parent=1 // pred_fallthru
      _
    // Predicated region
    $region30: #{nce_average_forward.1} parent=1 // pred_check
      _
    $region31: #{nce_average_forward.1} parent=1 // pred_check_branch
      %515 = sbr.rel (0) target = $region33
    $region32: #{nce_average_forward.1} parent=1 // pred_region
      _
    $region33: #{nce_average_forward.1} parent=1 // pred_fallthru
      _
    // Predicated region
    $region34: #{nce_average_forward.1} parent=1 // pred_check
      _
    $region35: #{nce_average_forward.1} parent=1 // pred_check_branch
      %517 = sbr.rel (0) target = $region37
    $region36: #{nce_average_forward.1} parent=1 // pred_region
      %518 = dma.done [#allocation3], 32
    $region37: #{nce_average_forward.1} parent=1 // pred_fallthru
      _
    // Predicated region
    $region38: #{nce_average_forward.1} parent=1 // pred_check
      _
    $region39: #{nce_average_forward.1} parent=1 // pred_check_branch
      %520 = sbr.rel (0) target = $region41
    $region40: #{nce_average_forward.1} parent=1 // pred_region
      %521 = dma.done [#allocation5], 32
    $region41: #{nce_average_forward.1} parent=1 // pred_fallthru
      _
    // Predicated region
    $region42: #{nce_average_forward.1} parent=1 // pred_check
      _
    $region43: #{nce_average_forward.1} parent=1 // pred_check_branch
      %523 = sbr.rel (0) target = $region45
    $region44: #{nce_average_forward.1} parent=1 // pred_region
      _
    $region45: #{nce_average_forward.1} parent=1 // pred_fallthru
      _
    // Predicated region
    $region46: #{nce_average_forward.1} parent=1 // pred_check
      _
    $region47: #{nce_average_forward.1} parent=1 // pred_check_branch
      %525 = sbr.rel (0) target = $region49
    $region48: #{nce_average_forward.1} parent=1 // pred_region
      _
    $region49: #{nce_average_forward.1} parent=1 // pred_fallthru
      _
    %526 = vsyncpa [#allocation3], 1
    %527 = vsyncpa [#allocation5], 1

</llo_original>
